<compile_context>
chip_gen: v7x
topology: tpu7x:2x2x1
jax: 0.10.0
libtpu: 0.0.40
codegen_flags: <defaults>
</compile_context>

<pallas_src>
import numpy as np

import jax
import jax.numpy as jnp
from jax import lax
from jax.experimental import pallas as pl
from jax.experimental.pallas import tpu as pltpu

_LANE = 128
_SUBLANE = 8


def _round_up(x, m):
    return ((x + m - 1) // m) * m


# ---------------------------------------------------------------------------
# Kernels
# ---------------------------------------------------------------------------
def _dist_kernel_batch_on_lanes(c_ref, csq_ref, esq_ref, e_ref, m_ref, out_ref):
    """Transposed layout (C < 128): distances are (C, TB), batch on lanes."""
    # c_ref:   (C, D)     centers (bf16/f32), resident, single-buffered
    # csq_ref: (C, 1)     ||c||^2, f32, resident
    # esq_ref: (1, TB)    ||e||^2, f32, lane-dense
    # e_ref:   (TB, D)    feature tile (bf16/f32)
    # m_ref:   (C, TB)    int8 membership mask tile (transposed)
    # out_ref: (1, 8, TB) lane-dense per-tile partial sums (row broadcast)
    ce = lax.dot_general(c_ref[...], e_ref[...], (((1,), (1,)), ((), ())),
                         preferred_element_type=jnp.float32)          # (C, TB)
    dist = csq_ref[...] + esq_ref[...] - 2.0 * ce                     # (C, TB)
    # Mask FIRST, then clamp (faithful to torch): every masked-out / padded
    # entry contributes exactly 1e-12.
    dist = jnp.clip(dist * m_ref[...].astype(jnp.float32), 1e-12, 1e12)
    partial = jnp.sum(dist, axis=0, keepdims=True)                    # (1, TB) sublane reduce
    out_ref[...] = jnp.broadcast_to(partial[None], out_ref.shape)


def _dist_kernel_classes_on_lanes(c_ref, csq_ref, esq_ref, e_ref, m_ref, out_ref):
    """Natural layout (C >= 128): distances are (TB, C), classes on lanes."""
    # c_ref:   (C, D)     centers, resident
    # csq_ref: (1, C)     ||c||^2, f32, lane-dense, resident
    # esq_ref: (TB, 1)    ||e||^2, f32
    # e_ref:   (TB, D)    feature tile
    # m_ref:   (TB, C)    int8 membership mask tile
    # out_ref: (1, 8, C)  lane-dense per-tile partial sums
    ec = lax.dot_general(e_ref[...], c_ref[...], (((1,), (1,)), ((), ())),
                         preferred_element_type=jnp.float32)          # (TB, C)
    dist = esq_ref[...] + csq_ref[...] - 2.0 * ec
    dist = jnp.clip(dist * m_ref[...].astype(jnp.float32), 1e-12, 1e12)
    partial = jnp.sum(dist, axis=0, keepdims=True)                    # (1, C) sublane reduce
    out_ref[...] = jnp.broadcast_to(partial[None], out_ref.shape)


# ---------------------------------------------------------------------------
# Generation-aware tiling
# ---------------------------------------------------------------------------
def _vmem_capacity_bytes():
    try:
        return int(pltpu.get_tpu_info().vmem_capacity_bytes)
    except Exception:
        return 64 * 1024 * 1024      # conservative (v7x per-TC) fallback


def _working_set_bytes(tb, bufs, C, D, feat_bytes):
    resident = C * D * feat_bytes + C * 4          # single-buffered centers + ||c||^2
    feat = bufs * tb * D * feat_bytes              # streamed feature tiles
    mask = bufs * C * tb                           # streamed int8 mask tiles
    esq = bufs * tb * 4                            # streamed ||e||^2 tiles
    outp = 2 * _SUBLANE * max(tb, C) * 4           # output partial blocks
    temps = 4 * C * tb * 4                         # ce / dist / f32 mask / slack
    return resident + feat + mask + esq + outp + temps


def _pick_tiling(n, C, D, feat_bytes, vmem_cap):
    """VMEM-budget-aware batch tile, stream buffer depth, vmem limit."""
    n128 = _round_up(max(n, 1), _LANE)
    # <= ~70% of per-core VMEM, hard-capped so a tile sized on a 128 MiB part
    # (v5e/v6e) still fits v7x's 64 MiB and leaves compiler scratch headroom.
    budget = min(int(vmem_cap * 0.70), 96 * 1024 * 1024)

    choice = None
    for cand in (1024, 512, 256, 128):
        if cand > n128:
            continue
        for bufs in (3, 2):                        # prefer deeper pipelining if it fits
            if _working_set_bytes(cand, bufs, C, D, feat_bytes) <= budget:
                choice = (cand, bufs)
                break
        if choice is not None:
            break
    if choice is None:                             # huge C*D: smallest legal tile
        choice = (_LANE, 2)
    tb, bufs = choice

    # Keep >= 2 grid tiles when possible so both v7x TensorCores get work
    # under dimension_semantics=("parallel",).
    while tb > _LANE and _round_up(n128, tb) // tb < 2:
        tb //= 2

    est = _working_set_bytes(tb, bufs, C, D, feat_bytes)
    vmem_limit = max(48 * 1024 * 1024, 2 * est, est + (8 << 20))
    vmem_limit = int(min(vmem_limit, int(vmem_cap * 0.85)))
    return tb, bufs, vmem_limit


# ---------------------------------------------------------------------------
# Fused masked squared-distance sum
# ---------------------------------------------------------------------------
def _masked_sqdist_sum(e, centers, mask, compute_dtype=jnp.bfloat16):
    """sum_ij clamp(mask_ij * ||e_i - c_j||^2, 1e-12, 1e12) in one pallas_call."""
    N, D = e.shape
    C = centers.shape[0]

    e = e.astype(compute_dtype)
    centers = centers.astype(compute_dtype)
    feat_bytes = np.dtype(compute_dtype).itemsize

    vmem_cap = _vmem_capacity_bytes()
    tb, bufs, vmem_limit = _pick_tiling(N, C, D, feat_bytes, vmem_cap)

    n_pad = _round_up(max(N, 1), tb)
    pad = n_pad - N
    if pad:
        e = jnp.pad(e, ((0, pad), (0, 0)))
        mask = jnp.pad(mask, ((0, pad), (0, 0)))
    n_tiles = n_pad // tb
    if n_tiles < 3:
        bufs = 2                                   # no point triple-buffering a 1-2 step grid

    # Row norms of the compute-dtype values, in f32, computed in the wrapper
    # (fused by XLA into the gather/concat) -> no in-kernel e*e / ones matmul.
    e32 = e.astype(jnp.float32)
    c32 = centers.astype(jnp.float32)
    e_sq = jnp.sum(e32 * e32, axis=1)              # (n_pad,)
    c_sq = jnp.sum(c32 * c32, axis=1)              # (C,)

    # NOTE: the label matrix is a 0/1 multi-hot membership mask in the
    # reference model, so it streams as int8 (4x fewer HBM bytes).
    mask_i8 = mask.astype(jnp.int8)

    transposed = C < _LANE                         # keep the batch on the lane axis for tiny C
    if transposed:
        kernel = _dist_kernel_batch_on_lanes
        operands = (centers, c_sq.reshape(C, 1), e_sq.reshape(1, n_pad),
                    e, jnp.transpose(mask_i8))
        out_lanes = tb
    else:
        kernel = _dist_kernel_classes_on_lanes
        operands = (centers, c_sq.reshape(1, C), e_sq.reshape(n_pad, 1),
                    e, mask_i8)
        out_lanes = C

    def build_specs(use_pipeline_mode):
        def spec(shape, index_map, buffers):
            if use_pipeline_mode:
                return pl.BlockSpec(shape, index_map,
                                    pipeline_mode=pl.Buffered(buffers))
            return pl.BlockSpec(shape, index_map)

        if transposed:
            in_specs = [
                spec((C, D), lambda i: (0, 0), 1),      # centers (resident)
                spec((C, 1), lambda i: (0, 0), 1),      # ||c||^2 (resident)
                spec((1, tb), lambda i: (0, i), bufs),  # ||e||^2 row
                spec((tb, D), lambda i: (i, 0), bufs),  # feature tile
                spec((C, tb), lambda i: (0, i), bufs),  # int8 mask tile (transposed)
            ]
        else:
            in_specs = [
                spec((C, D), lambda i: (0, 0), 1),
                spec((1, C), lambda i: (0, 0), 1),
                spec((tb, 1), lambda i: (i, 0), bufs),
                spec((tb, D), lambda i: (i, 0), bufs),
                spec((tb, C), lambda i: (i, 0), bufs),
            ]
        out_spec = pl.BlockSpec((1, _SUBLANE, out_lanes), lambda i: (i, 0, 0))
        return in_specs, out_spec

    def call(use_pipeline_mode):
        in_specs, out_spec = build_specs(use_pipeline_mode)
        return pl.pallas_call(
            kernel,
            out_shape=jax.ShapeDtypeStruct((n_tiles, _SUBLANE, out_lanes),
                                           jnp.float32),
            grid=(n_tiles,),
            in_specs=in_specs,
            out_specs=out_spec,
            compiler_params=pltpu.CompilerParams(
                dimension_semantics=("parallel",),
                vmem_limit_bytes=vmem_limit),
        )(*operands)

    try:
        partials = call(True)
    except Exception:
        # Graceful fallback if this runtime rejects pipeline_mode=pl.Buffered:
        # identical kernel with default (double) buffering everywhere.
        partials = call(False)

    total = jnp.sum(partials[:, 0, :])
    # Every padded (row, class) entry sits exactly on the 1e-12 clamp floor;
    # subtract that contribution so the result matches unpadded semantics.
    total = total - jnp.float32(pad * C * 1e-12)
    return total


# ---------------------------------------------------------------------------
# CenterLoss.forward wrapper
# ---------------------------------------------------------------------------
def center_loss_forward(user_batch, item_batch, user_emb, item_emb, centers,
                        label, user_count, constrain=100.0,
                        compute_dtype=jnp.bfloat16):
    """Reproduces CenterLoss.forward semantics (user + item batches fused)."""
    user_e = jnp.take(user_emb, user_batch, axis=0)
    item_e = jnp.take(item_emb, item_batch, axis=0)
    e = jnp.concatenate([user_e, item_e], axis=0)                    # (2B, D)

    all_idx = jnp.concatenate([user_batch, item_batch + user_count], axis=0)
    mask = jnp.take(label, all_idx, axis=0)                          # (2B, C)

    # Mask count in the wrapper (off the kernel critical path).
    size = jnp.sum(mask.astype(jnp.float32))
    # NOTE: like the torch reference, size == 0 would divide by zero.

    loss = _masked_sqdist_sum(e, centers, mask, compute_dtype=compute_dtype)
    return loss / size / constrain


# ---------------------------------------------------------------------------
# Pure-JAX reference + self-test
# ---------------------------------------------------------------------------
def _reference(user_batch, item_batch, user_emb, item_emb, centers, label,
               user_count, constrain=100.0, cast_dtype=None):
    def maybe_cast(x):
        return x if cast_dtype is None else x.astype(cast_dtype).astype(jnp.float32)

    user_e = maybe_cast(jnp.take(user_emb, user_batch, axis=0))
    item_e = maybe_cast(jnp.take(item_emb, item_batch, axis=0))
    c = maybe_cast(centers)
    mask_user = jnp.take(label, user_batch, axis=0).astype(jnp.float32)
    mask_item = jnp.take(label, item_batch + user_count, axis=0).astype(jnp.float32)

    def dist(x):
        return (jnp.sum(x * x, axis=1, keepdims=True)
                + jnp.sum(c * c, axis=1)[None, :]
                - 2.0 * x @ c.T)

    du = jnp.clip(dist(user_e) * mask_user, 1e-12, 1e12)
    di = jnp.clip(dist(item_e) * mask_item, 1e-12, 1e12)
    loss = jnp.sum(du) + jnp.sum(di)
    size = jnp.sum(mask_user) + jnp.sum(mask_item)
    return loss / size / constrain


def _run_case(name, key, num_classes, feat_dim, user_count, item_count, batch):
    k_ue, k_ie, k_c, k_lbl, k_ub, k_ib = jax.random.split(key, 6)

    user_emb = jax.random.normal(k_ue, (user_count, feat_dim), dtype=jnp.float32)
    item_emb = jax.random.normal(k_ie, (item_count, feat_dim), dtype=jnp.float32)
    centers = jax.random.normal(k_c, (num_classes, feat_dim), dtype=jnp.float32)
    label = jax.random.bernoulli(
        k_lbl, 0.5, (user_count + item_count, num_classes)).astype(jnp.float32)
    label = label.at[0, 0].set(1.0)     # guarantee a non-zero mask sum

    user_batch = jax.random.randint(k_ub, (batch,), 0, user_count, dtype=jnp.int32)
    item_batch = jax.random.randint(k_ib, (batch,), 0, item_count, dtype=jnp.int32)

    out = center_loss_forward(user_batch, item_batch, user_emb, item_emb,
                              centers, label, user_count)
    out = jax.block_until_ready(out)

    # Matched-precision (bf16-rounded features/centers) reference: tight tol.
    ref_bf16 = _reference(user_batch, item_batch, user_emb, item_emb, centers,
                          label, user_count, cast_dtype=jnp.bfloat16)
    # Pure f32 reference: loose tol (expected bf16-streaming drift).
    ref_f32 = _reference(user_batch, item_batch, user_emb, item_emb, centers,
                         label, user_count, cast_dtype=None)

    assert jnp.allclose(out, ref_bf16, rtol=1e-4, atol=1e-6), (name, out, ref_bf16)
    assert jnp.allclose(out, ref_f32, rtol=5e-2, atol=1e-3), (name, out, ref_f32)


if __name__ == "__main__":
    root = jax.random.PRNGKey(0)
    # Small C  -> transposed (batch-on-lanes) kernel path.
    _run_case("small_C", jax.random.fold_in(root, 1),
              num_classes=4, feat_dim=32, user_count=10, item_count=12, batch=8)
    # C >= 128 -> natural (classes-on-lanes) kernel path.
    _run_case("large_C", jax.random.fold_in(root, 2),
              num_classes=128, feat_dim=32, user_count=20, item_count=24, batch=16)
    print("KERNEL_OK")
</pallas_src>

<mosaic_0001>
module attributes {stable_mosaic.version = 11 : i64} {
  func.func @_dist_kernel_batch_on_lanes(%arg0: i32, %arg1: memref<4x32xbf16, #tpu.memory_space<vmem>>, %arg2: memref<4x1xf32, #tpu.memory_space<vmem>>, %arg3: memref<1x128xf32, #tpu.memory_space<vmem>>, %arg4: memref<128x32xbf16, #tpu.memory_space<vmem>>, %arg5: memref<4x128xi8, #tpu.memory_space<vmem>>, %arg6: memref<1x8x128xf32, #tpu.memory_space<vmem>>) attributes {dimension_semantics = [#tpu.dimension_semantics<parallel>], iteration_bounds = array<i64: 1>, scalar_prefetch = 0 : i64, scratch_operands = 0 : i64, tpu.core_type = #tpu.core_type<tc>, window_params = [{pipeline_mode = #tpu.pipeline_mode<synchronous>, transform_indices = @transform_0, window_bounds = array<i64: 4, 32>}, {pipeline_mode = #tpu.pipeline_mode<synchronous>, transform_indices = @transform_1, window_bounds = array<i64: 4, 1>}, {pipeline_mode = #tpu.pipeline_mode<double_buffered>, transform_indices = @transform_2, window_bounds = array<i64: 1, 128>}, {pipeline_mode = #tpu.pipeline_mode<double_buffered>, transform_indices = @transform_3, window_bounds = array<i64: 128, 32>}, {pipeline_mode = #tpu.pipeline_mode<double_buffered>, transform_indices = @transform_4, window_bounds = array<i64: 4, 128>}, {transform_indices = @transform_5, window_bounds = array<i64: 1, 8, 128>}]} {
    %c0 = arith.constant 0 : index
    %c0_0 = arith.constant 0 : index
    %0 = vector.load %arg1[%c0, %c0_0] : memref<4x32xbf16, #tpu.memory_space<vmem>>, vector<4x32xbf16>
    %c0_1 = arith.constant 0 : index
    %c0_2 = arith.constant 0 : index
    %1 = vector.load %arg4[%c0_1, %c0_2] : memref<128x32xbf16, #tpu.memory_space<vmem>>, vector<128x32xbf16>
    %cst = arith.constant dense<0.000000e+00> : vector<4x128xf32>
    %2 = tpu.matmul %0, %1, %cst {dimension_numbers = #tpu.dot_dimension_numbers<[1], [1], [0], [0], [0, 0, 1, 0], [], []>} : vector<4x32xbf16>, vector<128x32xbf16>, vector<4x128xf32> -> vector<4x128xf32>
    %c0_3 = arith.constant 0 : index
    %c0_4 = arith.constant 0 : index
    %3 = vector.load %arg2[%c0_3, %c0_4] : memref<4x1xf32, #tpu.memory_space<vmem>>, vector<4x1xf32>
    %c0_5 = arith.constant 0 : index
    %c0_6 = arith.constant 0 : index
    %4 = vector.load %arg3[%c0_5, %c0_6] : memref<1x128xf32, #tpu.memory_space<vmem>>, vector<1x128xf32>
    %5 = vector.broadcast %3 : vector<4x1xf32> to vector<4x128xf32>
    %6 = vector.broadcast %4 : vector<1x128xf32> to vector<4x128xf32>
    %7 = arith.addf %5, %6 : vector<4x128xf32>
    %cst_7 = arith.constant 2.000000e+00 : f32
    %8 = vector.broadcast %cst_7 : f32 to vector<4x128xf32>
    %9 = arith.mulf %8, %2 : vector<4x128xf32>
    %10 = arith.subf %7, %9 : vector<4x128xf32>
    %c0_8 = arith.constant 0 : index
    %c0_9 = arith.constant 0 : index
    %11 = vector.load %arg5[%c0_8, %c0_9] : memref<4x128xi8, #tpu.memory_space<vmem>>, vector<4x128xi8>
    %12 = arith.sitofp %11 : vector<4x128xi8> to vector<4x128xf32>
    %13 = arith.mulf %10, %12 : vector<4x128xf32>
    %cst_10 = arith.constant 9.99999996E-13 : f32
    %cst_11 = arith.constant 9.99999995E+11 : f32
    %14 = vector.broadcast %cst_10 : f32 to vector<4x128xf32>
    %15 = arith.maximumf %14, %13 : vector<4x128xf32>
    %16 = vector.broadcast %cst_11 : f32 to vector<4x128xf32>
    %17 = arith.minimumf %16, %15 : vector<4x128xf32>
    %cst_12 = arith.constant dense<0.000000e+00> : vector<128xf32>
    %18 = vector.multi_reduction <add>, %17, %cst_12 [0] : vector<4x128xf32> to vector<128xf32>
    %19 = vector.shape_cast %18 : vector<128xf32> to vector<1x128xf32>
    %20 = vector.shape_cast %19 : vector<1x128xf32> to vector<1x1x128xf32>
    %21 = vector.shape_cast %20 : vector<1x1x128xf32> to vector<1x1x128xf32>
    %22 = vector.broadcast %21 : vector<1x1x128xf32> to vector<1x8x128xf32>
    %c0_13 = arith.constant 0 : index
    %c0_14 = arith.constant 0 : index
    %c0_15 = arith.constant 0 : index
    %23 = vector.load %arg6[%c0_13, %c0_14, %c0_15] : memref<1x8x128xf32, #tpu.memory_space<vmem>>, vector<1x8x128xf32>
    tpu.vector_store %arg6[%c0_13, %c0_14, %c0_15], %22 {strides = array<i32>} : memref<1x8x128xf32, #tpu.memory_space<vmem>>, vector<1x8x128xf32>,
    return
  }
  func.func @transform_0(%arg0: i32) -> (i32, i32) {
    %c0_i32 = arith.constant 0 : i32
    %c0_i32_0 = arith.constant 0 : i32
    %c0_i32_1 = arith.constant 0 : i32
    return %c0_i32, %c0_i32_0 : i32, i32
  }
  func.func @transform_1(%arg0: i32) -> (i32, i32) {
    %c0_i32 = arith.constant 0 : i32
    %c0_i32_0 = arith.constant 0 : i32
    %c0_i32_1 = arith.constant 0 : i32
    return %c0_i32, %c0_i32_0 : i32, i32
  }
  func.func @transform_2(%arg0: i32) -> (i32, i32) {
    %c0_i32 = arith.constant 0 : i32
    %c0_i32_0 = arith.constant 0 : i32
    return %c0_i32, %arg0 : i32, i32
  }
  func.func @transform_3(%arg0: i32) -> (i32, i32) {
    %c0_i32 = arith.constant 0 : i32
    %c0_i32_0 = arith.constant 0 : i32
    return %arg0, %c0_i32 : i32, i32
  }
  func.func @transform_4(%arg0: i32) -> (i32, i32) {
    %c0_i32 = arith.constant 0 : i32
    %c0_i32_0 = arith.constant 0 : i32
    return %c0_i32, %arg0 : i32, i32
  }
  func.func @transform_5(%arg0: i32) -> (i32, i32, i32) {
    %c0_i32 = arith.constant 0 : i32
    %c0_i32_0 = arith.constant 0 : i32
    %c0_i32_1 = arith.constant 0 : i32
    return %arg0, %c0_i32, %c0_i32_0 : i32, i32, i32
  }
}

module attributes {stable_mosaic.version = 11 : i64} {
  func.func @_dist_kernel_batch_on_lanes(%arg0: i32, %arg1: memref<4x32xbf16, #tpu.memory_space<vmem>>, %arg2: memref<4x1xf32, #tpu.memory_space<vmem>>, %arg3: memref<1x128xf32, #tpu.memory_space<vmem>>, %arg4: memref<128x32xbf16, #tpu.memory_space<vmem>>, %arg5: memref<4x128xi8, #tpu.memory_space<vmem>>, %arg6: memref<1x8x128xf32, #tpu.memory_space<vmem>>) attributes {dimension_semantics = [#tpu.dimension_semantics<parallel>], iteration_bounds = array<i64: 1>, scalar_prefetch = 0 : i64, scratch_operands = 0 : i64, tpu.core_type = #tpu.core_type<tc>, window_params = [{pipeline_mode = #tpu.pipeline_mode<synchronous>, transform_indices = @transform_0, window_bounds = array<i64: 4, 32>}, {pipeline_mode = #tpu.pipeline_mode<synchronous>, transform_indices = @transform_1, window_bounds = array<i64: 4, 1>}, {transform_indices = @transform_2, window_bounds = array<i64: 1, 128>}, {transform_indices = @transform_3, window_bounds = array<i64: 128, 32>}, {transform_indices = @transform_4, window_bounds = array<i64: 4, 128>}, {transform_indices = @transform_5, window_bounds = array<i64: 1, 8, 128>}]} {
    %c0 = arith.constant 0 : index
    %c0_0 = arith.constant 0 : index
    %0 = vector.load %arg1[%c0, %c0_0] : memref<4x32xbf16, #tpu.memory_space<vmem>>, vector<4x32xbf16>
    %c0_1 = arith.constant 0 : index
    %c0_2 = arith.constant 0 : index
    %1 = vector.load %arg4[%c0_1, %c0_2] : memref<128x32xbf16, #tpu.memory_space<vmem>>, vector<128x32xbf16>
    %cst = arith.constant dense<0.000000e+00> : vector<4x128xf32>
    %2 = tpu.matmul %0, %1, %cst {dimension_numbers = #tpu.dot_dimension_numbers<[1], [1], [0], [0], [0, 0, 1, 0], [], []>} : vector<4x32xbf16>, vector<128x32xbf16>, vector<4x128xf32> -> vector<4x128xf32>
    %c0_3 = arith.constant 0 : index
    %c0_4 = arith.constant 0 : index
    %3 = vector.load %arg2[%c0_3, %c0_4] : memref<4x1xf32, #tpu.memory_space<vmem>>, vector<4x1xf32>
    %c0_5 = arith.constant 0 : index
    %c0_6 = arith.constant 0 : index
    %4 = vector.load %arg3[%c0_5, %c0_6] : memref<1x128xf32, #tpu.memory_space<vmem>>, vector<1x128xf32>
    %5 = vector.broadcast %3 : vector<4x1xf32> to vector<4x128xf32>
    %6 = vector.broadcast %4 : vector<1x128xf32> to vector<4x128xf32>
    %7 = arith.addf %5, %6 : vector<4x128xf32>
    %cst_7 = arith.constant 2.000000e+00 : f32
    %8 = vector.broadcast %cst_7 : f32 to vector<4x128xf32>
    %9 = arith.mulf %8, %2 : vector<4x128xf32>
    %10 = arith.subf %7, %9 : vector<4x128xf32>
    %c0_8 = arith.constant 0 : index
    %c0_9 = arith.constant 0 : index
    %11 = vector.load %arg5[%c0_8, %c0_9] : memref<4x128xi8, #tpu.memory_space<vmem>>, vector<4x128xi8>
    %12 = arith.sitofp %11 : vector<4x128xi8> to vector<4x128xf32>
    %13 = arith.mulf %10, %12 : vector<4x128xf32>
    %cst_10 = arith.constant 9.99999996E-13 : f32
    %cst_11 = arith.constant 9.99999995E+11 : f32
    %14 = vector.broadcast %cst_10 : f32 to vector<4x128xf32>
    %15 = arith.maximumf %14, %13 : vector<4x128xf32>
    %16 = vector.broadcast %cst_11 : f32 to vector<4x128xf32>
    %17 = arith.minimumf %16, %15 : vector<4x128xf32>
    %cst_12 = arith.constant dense<0.000000e+00> : vector<128xf32>
    %18 = vector.multi_reduction <add>, %17, %cst_12 [0] : vector<4x128xf32> to vector<128xf32>
    %19 = vector.shape_cast %18 : vector<128xf32> to vector<1x128xf32>
    %20 = vector.shape_cast %19 : vector<1x128xf32> to vector<1x1x128xf32>
    %21 = vector.shape_cast %20 : vector<1x1x128xf32> to vector<1x1x128xf32>
    %22 = vector.broadcast %21 : vector<1x1x128xf32> to vector<1x8x128xf32>
    %c0_13 = arith.constant 0 : index
    %c0_14 = arith.constant 0 : index
    %c0_15 = arith.constant 0 : index
    %23 = vector.load %arg6[%c0_13, %c0_14, %c0_15] : memref<1x8x128xf32, #tpu.memory_space<vmem>>, vector<1x8x128xf32>
    tpu.vector_store %arg6[%c0_13, %c0_14, %c0_15], %22 {strides = array<i32>} : memref<1x8x128xf32, #tpu.memory_space<vmem>>, vector<1x8x128xf32>,
    return
  }
  func.func @transform_0(%arg0: i32) -> (i32, i32) {
    %c0_i32 = arith.constant 0 : i32
    %c0_i32_0 = arith.constant 0 : i32
    %c0_i32_1 = arith.constant 0 : i32
    return %c0_i32, %c0_i32_0 : i32, i32
  }
  func.func @transform_1(%arg0: i32) -> (i32, i32) {
    %c0_i32 = arith.constant 0 : i32
    %c0_i32_0 = arith.constant 0 : i32
    %c0_i32_1 = arith.constant 0 : i32
    return %c0_i32, %c0_i32_0 : i32, i32
  }
  func.func @transform_2(%arg0: i32) -> (i32, i32) {
    %c0_i32 = arith.constant 0 : i32
    %c0_i32_0 = arith.constant 0 : i32
    return %c0_i32, %arg0 : i32, i32
  }
  func.func @transform_3(%arg0: i32) -> (i32, i32) {
    %c0_i32 = arith.constant 0 : i32
    %c0_i32_0 = arith.constant 0 : i32
    return %arg0, %c0_i32 : i32, i32
  }
  func.func @transform_4(%arg0: i32) -> (i32, i32) {
    %c0_i32 = arith.constant 0 : i32
    %c0_i32_0 = arith.constant 0 : i32
    return %c0_i32, %arg0 : i32, i32
  }
  func.func @transform_5(%arg0: i32) -> (i32, i32, i32) {
    %c0_i32 = arith.constant 0 : i32
    %c0_i32_0 = arith.constant 0 : i32
    %c0_i32_1 = arith.constant 0 : i32
    return %arg0, %c0_i32, %c0_i32_0 : i32, i32, i32
  }
}

</mosaic_0001>

<llo_original>
// kernel: tpu_custom_call.1
$region0: #{tpu_custom_call.1}
  #allocation0 [shape = 'u32[]', space=smem, size = 0x4, offset = 0x4, fixed_abs, tag = 'smem constant byte address 0x4 - core index']
  #allocation1 [shape = 'u32[144,128]{1,0:T(1,128)}', space=vmem, size = 0x12000, scoped, tag = 'internal scratch']
  %s0 = inlined_call_operand.vmem [shape: bf16[4,32], index: 0, kind: input, shape index: {}]
  %s1 = inlined_call_operand.vmem [shape: f32[4,1], index: 1, kind: input, shape index: {}]
  %s2 = inlined_call_operand.vmem [shape: f32[1,128], index: 2, kind: input, shape index: {}]
  %s3 = inlined_call_operand.vmem [shape: bf16[128,32], index: 3, kind: input, shape index: {}]
  %s4 = inlined_call_operand.vmem [shape: s8[4,128], index: 4, kind: input, shape index: {}]
  %s5 = inlined_call_operand.hbm [shape: f32[1,8,128], index: 5, kind: output, shape index: {}]
  %s6 = sld [smem:[#allocation0]]
  $region30: #{tpu_custom_call.1} parent=0
    _
  %s8 = ssub.s32 1, %s6
  %s9 = scalar_select 0, %s8, %s6
  $region1: #{tpu_custom_call.1} parent=0
    #allocation2 [shape = 'u8[4096]{0}', space=vmem, size = 0x1000, scoped, tag = 'output window, operand 0, single buffered']
    #allocation3 [shape = 's32[1]{0}', space=sflag, size = 0x4, scoped, tag = 'scoped memory for tpu_custom_call.1']
    %10 = vsyncpa [#allocation3], 0
    // Predicated region
    $region2: #{tpu_custom_call.1} parent=1 // pred_check
      _
    $region3: #{tpu_custom_call.1} parent=1 // pred_check_branch
      %12 = sbr.rel (0) target = $region5
    $region4: #{tpu_custom_call.1} parent=1 // pred_region
      _
    $region5: #{tpu_custom_call.1} parent=1 // pred_fallthru
      _
    // Predicated region
    $region6: #{tpu_custom_call.1} parent=1 // pred_check
      _
    $region7: #{tpu_custom_call.1} parent=1 // pred_check_branch
      %14 = sbr.rel (0) target = $region9
    $region8: #{tpu_custom_call.1} parent=1 // pred_region
      _
    $region9: #{tpu_custom_call.1} parent=1 // pred_fallthru
      _
    // Predicated region
    $region10: #{tpu_custom_call.1} parent=1 // pred_check
      _
    $region11: #{tpu_custom_call.1} parent=1 // pred_check_branch
      %16 = sbr.rel (0) target = $region13
    $region12: #{tpu_custom_call.1} parent=1 // pred_region
      _
    $region13: #{tpu_custom_call.1} parent=1 // pred_fallthru
      _
    // Predicated region
    $region14: #{tpu_custom_call.1} parent=1 // pred_check
      _
    $region15: #{tpu_custom_call.1} parent=1 // pred_check_branch
      %18 = sbr.rel (0) target = $region17
    $region16: #{tpu_custom_call.1} parent=1 // pred_region
      _
    $region17: #{tpu_custom_call.1} parent=1 // pred_fallthru
      _
    // Predicated region
    $region18: #{tpu_custom_call.1} parent=1 // pred_check
      _
    $region19: #{tpu_custom_call.1} parent=1 // pred_check_branch
      %20 = sbr.rel (0) target = $region21
    $region20: #{tpu_custom_call.1} parent=1 // pred_region
      _
    $region21: #{tpu_custom_call.1} parent=1 // pred_fallthru
      _
    %v22 = vld [vmem:[%s0] sm:$0x3]
    %v23 = vld [vmem:[%s3] sm:$0xf]
    %v24 = vld [vmem:[%s3 + $0x4] sm:$0xf]
    %v25 = vld [vmem:[%s3 + $0x8] sm:$0xf]
    %v26 = vld [vmem:[%s3 + $0xc] sm:$0xf]
    %v27 = vld [vmem:[%s3 + $0x10] sm:$0xf]
    %v28 = vld [vmem:[%s3 + $0x14] sm:$0xf]
    %v29 = vld [vmem:[%s3 + $0x18] sm:$0xf]
    %v30 = vld [vmem:[%s3 + $0x1c] sm:$0xf]
    %v31 = vld [vmem:[%s3 + $0x20] sm:$0xf]
    %v32 = vld [vmem:[%s3 + $0x24] sm:$0xf]
    %v33 = vld [vmem:[%s3 + $0x28] sm:$0xf]
    %v34 = vld [vmem:[%s3 + $0x2c] sm:$0xf]
    %v35 = vld [vmem:[%s3 + $0x30] sm:$0xf]
    %v36 = vld [vmem:[%s3 + $0x34] sm:$0xf]
    %v37 = vld [vmem:[%s3 + $0x38] sm:$0xf]
    %v38 = vld [vmem:[%s3 + $0x3c] sm:$0xf]
    %v55 = vunpack.c.l.b16 %v23
    %v56 = vunpack.c.l.b16 %v24
    %v57 = vunpack.c.l.b16 %v25
    %v58 = vunpack.c.l.b16 %v26
    %v59 = vunpack.c.l.b16 %v27
    %v60 = vunpack.c.l.b16 %v28
    %v61 = vunpack.c.l.b16 %v29
    %v62 = vunpack.c.l.b16 %v30
    %v63 = vunpack.c.l.b16 %v31
    %v64 = vunpack.c.l.b16 %v32
    %v65 = vunpack.c.l.b16 %v33
    %v66 = vunpack.c.l.b16 %v34
    %v67 = vunpack.c.l.b16 %v35
    %v68 = vunpack.c.l.b16 %v36
    %v69 = vunpack.c.l.b16 %v37
    %v70 = vunpack.c.l.b16 %v38
    %v71 = vpack.c.b16 %v56, %v55
    %v72 = vpack.c.b16 %v58, %v57
    %v73 = vpack.c.b16 %v60, %v59
    %v74 = vpack.c.b16 %v62, %v61
    %v75 = vpack.c.b16 %v64, %v63
    %v76 = vpack.c.b16 %v66, %v65
    %v77 = vpack.c.b16 %v68, %v67
    %v78 = vpack.c.b16 %v70, %v69
    %vm79 = vcmask 261120
    %v81 = vsel %vm79, %v22, 0
    %v84 = vsel %vm79, %v71, 0
    %v87 = vsel %vm79, %v72, 0
    %v90 = vsel %vm79, %v73, 0
    %v93 = vsel %vm79, %v74, 0
    %v96 = vsel %vm79, %v75, 0
    %v99 = vsel %vm79, %v76, 0
    %v102 = vsel %vm79, %v77, 0
    %v105 = vsel %vm79, %v78, 0
    %107 = vmatprep.subr.bf16.mxu0 0
    %108 = vmatpush1.bf16.xpose.msra.mxu0 %v84
    %109 = vmatprep.subr.bf16.mxu0 0
    %110 = vmatpush1.bf16.xpose.msra.mxu0 %v87
    %111 = vmatprep.subr.bf16.mxu0 0
    %112 = vmatpush1.bf16.xpose.msra.mxu0 %v90
    %113 = vmatprep.subr.bf16.mxu0 0
    %114 = vmatpush1.bf16.xpose.msra.mxu0 %v93
    %115 = vmatprep.subr.bf16.mxu0 0
    %116 = vmatpush1.bf16.xpose.msra.mxu0 %v96
    %117 = vmatprep.subr.bf16.mxu0 0
    %118 = vmatpush1.bf16.xpose.msra.mxu0 %v99
    %119 = vmatprep.subr.bf16.mxu0 0
    %120 = vmatpush1.bf16.xpose.msra.mxu0 %v102
    %121 = vmatprep.subr.bf16.mxu0 0
    %122 = vmatpush1.bf16.xpose.msra.mxu0 %v105
    %123 = vmatprep.subr.bf16.mxu0 0
    %124 = vmatpush1.bf16.xpose.msra.mxu0 0
    %125 = vmatprep.subr.bf16.mxu0 0
    %126 = vmatpush1.bf16.xpose.msra.mxu0 0
    %127 = vmatprep.subr.bf16.mxu0 0
    %128 = vmatpush1.bf16.xpose.msra.mxu0 0
    %129 = vmatprep.subr.bf16.mxu0 0
    %130 = vmatpush1.bf16.xpose.msra.mxu0 0
    %131 = vmatprep.subr.bf16.mxu0 0
    %132 = vmatpush1.bf16.xpose.msra.mxu0 0
    %133 = vmatprep.subr.bf16.mxu0 0
    %134 = vmatpush1.bf16.xpose.msra.mxu0 0
    %135 = vmatprep.subr.bf16.mxu0 0
    %136 = vmatpush1.bf16.xpose.msra.mxu0 0
    %137 = vmatprep.subr.bf16.mxu0 0
    %138 = vmatpush1.bf16.xpose.msra.mxu0 0
    %139 = vmatprep.mubr.bf16.mxu0 0
    %140 = vmatmul.mubr.bf16.gmra.mrb[0].mxu0 %v81
    %v141 = vpop.f32.mrb[0].mxu0
    %v142 = vadd.f32 0.0, %v141
    %v143 = vpop.f32.mrb[0].mxu0
    %v144 = vpop.f32.mrb[0].mxu0
    %v145 = vpop.f32.mrb[0].mxu0
    %146 = vdwg.mxu0
    %v147 = vld [vmem:[%s1] sm:$0xf]
    %v148 = vld [vmem:[%s2] sm:$0x1]
    %150 = vset.pattern.permute.xlu0 0
    %151 = vperm.xlu0 %150, %v147
    %v152 = vpop.permute.xlu0 %151
    %v155 = vlaneseq
    %v156 = vshrl.u32 %v155, 7
    %v157 = vsub.s32 0, %v156
    %v158 = vrot.slane %v148, %v157
    %v160 = vadd.f32 %v152, %v158
    %v161 = vmul.f32 %v142, 2.0
    %v162 = vsub.f32 %v160, %v161
    %v163 = vld [vmem:[%s4] sm:$0x1]
    %v164 = vunpack.c.0.s8 %v163
    %v165 = vcvt.s32.f32 %v164
    %v166 = vmul.f32 %v162, %v165
    %v167 = vmax.f32 %v166, 1e-12
    %v168 = vmin.f32 %v167, 1e+12
    %vm169 = vcmask 1043456
    %v170 = vsel %vm169, %v168, 0.0
    %v171 = vrot.slane %v170, 4
    %v172 = vadd.f32 %v170, %v171
    %v173 = vrot.slane %v172, 2
    %v174 = vadd.f32 %v172, %v173
    %v175 = vrot.slane %v174, 1
    %v176 = vadd.f32 %v174, %v175
    %177 = vst [vmem:[#allocation2] sm:$0xff] %v176
    // Predicated region
    $region22: #{tpu_custom_call.1} parent=1 // pred_check
      _
    $region23: #{tpu_custom_call.1} parent=1 // pred_check_branch
      %179 = sbr.rel (0) target = $region25
    $region24: #{tpu_custom_call.1} parent=1 // pred_region
      %s181 = ssub.s32 128, 128
      %182 = vsyncadd [#allocation3], %s181
      %s184 = sshll.u32 [#allocation2], 4
      %s185 = int_to_ptr.vmem [resolvable:$true] %s184
      %187 = dma.vmem_to_hbm [thread:$0]  %s185, 128, %s5, [#allocation3]
    $region25: #{tpu_custom_call.1} parent=1 // pred_fallthru
      _
    // Predicated region
    $region26: #{tpu_custom_call.1} parent=1 // pred_check
      _
    $region27: #{tpu_custom_call.1} parent=1 // pred_check_branch
      %189 = sbr.rel (0) target = $region29
    $region28: #{tpu_custom_call.1} parent=1 // pred_region
      %190 = dma.done [#allocation3], 128
    $region29: #{tpu_custom_call.1} parent=1 // pred_fallthru
      _
    %191 = vsyncpa [#allocation3], 1

// kernel: tpu_custom_call.1
$region0: #{tpu_custom_call.1}
  #allocation0 [shape = 'u32[]', space=smem, size = 0x4, offset = 0x4, fixed_abs, tag = 'smem constant byte address 0x4 - core index']
  #allocation1 [shape = 'u32[144,128]{1,0:T(1,128)}', space=vmem, size = 0x12000, scoped, tag = 'internal scratch']
  %s0 = inlined_call_operand.vmem [shape: bf16[4,32], index: 0, kind: input, shape index: {}]
  %s1 = inlined_call_operand.vmem [shape: f32[4,1], index: 1, kind: input, shape index: {}]
  %s2 = inlined_call_operand.vmem [shape: f32[1,128], index: 2, kind: input, shape index: {}]
  %s3 = inlined_call_operand.vmem [shape: bf16[128,32], index: 3, kind: input, shape index: {}]
  %s4 = inlined_call_operand.vmem [shape: s8[4,128], index: 4, kind: input, shape index: {}]
  %s5 = inlined_call_operand.hbm [shape: f32[1,8,128], index: 5, kind: output, shape index: {}]
  %s6 = sld [smem:[#allocation0]]
  $region30: #{tpu_custom_call.1} parent=0
    _
  %s8 = ssub.s32 1, %s6
  %s9 = scalar_select 0, %s8, %s6
  $region1: #{tpu_custom_call.1} parent=0
    #allocation2 [shape = 'u8[4096]{0}', space=vmem, size = 0x1000, scoped, tag = 'output window, operand 0, single buffered']
    #allocation3 [shape = 's32[1]{0}', space=sflag, size = 0x4, scoped, tag = 'scoped memory for tpu_custom_call.1']
    %10 = vsyncpa [#allocation3], 0
    // Predicated region
    $region2: #{tpu_custom_call.1} parent=1 // pred_check
      _
    $region3: #{tpu_custom_call.1} parent=1 // pred_check_branch
      %12 = sbr.rel (0) target = $region5
    $region4: #{tpu_custom_call.1} parent=1 // pred_region
      _
    $region5: #{tpu_custom_call.1} parent=1 // pred_fallthru
      _
    // Predicated region
    $region6: #{tpu_custom_call.1} parent=1 // pred_check
      _
    $region7: #{tpu_custom_call.1} parent=1 // pred_check_branch
      %14 = sbr.rel (0) target = $region9
    $region8: #{tpu_custom_call.1} parent=1 // pred_region
      _
    $region9: #{tpu_custom_call.1} parent=1 // pred_fallthru
      _
    // Predicated region
    $region10: #{tpu_custom_call.1} parent=1 // pred_check
      _
    $region11: #{tpu_custom_call.1} parent=1 // pred_check_branch
      %16 = sbr.rel (0) target = $region13
    $region12: #{tpu_custom_call.1} parent=1 // pred_region
      _
    $region13: #{tpu_custom_call.1} parent=1 // pred_fallthru
      _
    // Predicated region
    $region14: #{tpu_custom_call.1} parent=1 // pred_check
      _
    $region15: #{tpu_custom_call.1} parent=1 // pred_check_branch
      %18 = sbr.rel (0) target = $region17
    $region16: #{tpu_custom_call.1} parent=1 // pred_region
      _
    $region17: #{tpu_custom_call.1} parent=1 // pred_fallthru
      _
    // Predicated region
    $region18: #{tpu_custom_call.1} parent=1 // pred_check
      _
    $region19: #{tpu_custom_call.1} parent=1 // pred_check_branch
      %20 = sbr.rel (0) target = $region21
    $region20: #{tpu_custom_call.1} parent=1 // pred_region
      _
    $region21: #{tpu_custom_call.1} parent=1 // pred_fallthru
      _
    %v22 = vld [vmem:[%s0] sm:$0x3]
    %v23 = vld [vmem:[%s3] sm:$0xf]
    %v24 = vld [vmem:[%s3 + $0x4] sm:$0xf]
    %v25 = vld [vmem:[%s3 + $0x8] sm:$0xf]
    %v26 = vld [vmem:[%s3 + $0xc] sm:$0xf]
    %v27 = vld [vmem:[%s3 + $0x10] sm:$0xf]
    %v28 = vld [vmem:[%s3 + $0x14] sm:$0xf]
    %v29 = vld [vmem:[%s3 + $0x18] sm:$0xf]
    %v30 = vld [vmem:[%s3 + $0x1c] sm:$0xf]
    %v31 = vld [vmem:[%s3 + $0x20] sm:$0xf]
    %v32 = vld [vmem:[%s3 + $0x24] sm:$0xf]
    %v33 = vld [vmem:[%s3 + $0x28] sm:$0xf]
    %v34 = vld [vmem:[%s3 + $0x2c] sm:$0xf]
    %v35 = vld [vmem:[%s3 + $0x30] sm:$0xf]
    %v36 = vld [vmem:[%s3 + $0x34] sm:$0xf]
    %v37 = vld [vmem:[%s3 + $0x38] sm:$0xf]
    %v38 = vld [vmem:[%s3 + $0x3c] sm:$0xf]
    %v55 = vunpack.c.l.b16 %v23
    %v56 = vunpack.c.l.b16 %v24
    %v57 = vunpack.c.l.b16 %v25
    %v58 = vunpack.c.l.b16 %v26
    %v59 = vunpack.c.l.b16 %v27
    %v60 = vunpack.c.l.b16 %v28
    %v61 = vunpack.c.l.b16 %v29
    %v62 = vunpack.c.l.b16 %v30
    %v63 = vunpack.c.l.b16 %v31
    %v64 = vunpack.c.l.b16 %v32
    %v65 = vunpack.c.l.b16 %v33
    %v66 = vunpack.c.l.b16 %v34
    %v67 = vunpack.c.l.b16 %v35
    %v68 = vunpack.c.l.b16 %v36
    %v69 = vunpack.c.l.b16 %v37
    %v70 = vunpack.c.l.b16 %v38
    %v71 = vpack.c.b16 %v56, %v55
    %v72 = vpack.c.b16 %v58, %v57
    %v73 = vpack.c.b16 %v60, %v59
    %v74 = vpack.c.b16 %v62, %v61
    %v75 = vpack.c.b16 %v64, %v63
    %v76 = vpack.c.b16 %v66, %v65
    %v77 = vpack.c.b16 %v68, %v67
    %v78 = vpack.c.b16 %v70, %v69
    %vm79 = vcmask 261120
    %v81 = vsel %vm79, %v22, 0
    %v84 = vsel %vm79, %v71, 0
    %v87 = vsel %vm79, %v72, 0
    %v90 = vsel %vm79, %v73, 0
    %v93 = vsel %vm79, %v74, 0
    %v96 = vsel %vm79, %v75, 0
    %v99 = vsel %vm79, %v76, 0
    %v102 = vsel %vm79, %v77, 0
    %v105 = vsel %vm79, %v78, 0
    %107 = vmatprep.subr.bf16.mxu0 0
    %108 = vmatpush1.bf16.xpose.msra.mxu0 %v84
    %109 = vmatprep.subr.bf16.mxu0 0
    %110 = vmatpush1.bf16.xpose.msra.mxu0 %v87
    %111 = vmatprep.subr.bf16.mxu0 0
    %112 = vmatpush1.bf16.xpose.msra.mxu0 %v90
    %113 = vmatprep.subr.bf16.mxu0 0
    %114 = vmatpush1.bf16.xpose.msra.mxu0 %v93
    %115 = vmatprep.subr.bf16.mxu0 0
    %116 = vmatpush1.bf16.xpose.msra.mxu0 %v96
    %117 = vmatprep.subr.bf16.mxu0 0
    %118 = vmatpush1.bf16.xpose.msra.mxu0 %v99
    %119 = vmatprep.subr.bf16.mxu0 0
    %120 = vmatpush1.bf16.xpose.msra.mxu0 %v102
    %121 = vmatprep.subr.bf16.mxu0 0
    %122 = vmatpush1.bf16.xpose.msra.mxu0 %v105
    %123 = vmatprep.subr.bf16.mxu0 0
    %124 = vmatpush1.bf16.xpose.msra.mxu0 0
    %125 = vmatprep.subr.bf16.mxu0 0
    %126 = vmatpush1.bf16.xpose.msra.mxu0 0
    %127 = vmatprep.subr.bf16.mxu0 0
    %128 = vmatpush1.bf16.xpose.msra.mxu0 0
    %129 = vmatprep.subr.bf16.mxu0 0
    %130 = vmatpush1.bf16.xpose.msra.mxu0 0
    %131 = vmatprep.subr.bf16.mxu0 0
    %132 = vmatpush1.bf16.xpose.msra.mxu0 0
    %133 = vmatprep.subr.bf16.mxu0 0
    %134 = vmatpush1.bf16.xpose.msra.mxu0 0
    %135 = vmatprep.subr.bf16.mxu0 0
    %136 = vmatpush1.bf16.xpose.msra.mxu0 0
    %137 = vmatprep.subr.bf16.mxu0 0
    %138 = vmatpush1.bf16.xpose.msra.mxu0 0
    %139 = vmatprep.mubr.bf16.mxu0 0
    %140 = vmatmul.mubr.bf16.gmra.mrb[0].mxu0 %v81
    %v141 = vpop.f32.mrb[0].mxu0
    %v142 = vadd.f32 0.0, %v141
    %v143 = vpop.f32.mrb[0].mxu0
    %v144 = vpop.f32.mrb[0].mxu0
    %v145 = vpop.f32.mrb[0].mxu0
    %146 = vdwg.mxu0
    %v147 = vld [vmem:[%s1] sm:$0xf]
    %v148 = vld [vmem:[%s2] sm:$0x1]
    %150 = vset.pattern.permute.xlu0 0
    %151 = vperm.xlu0 %150, %v147
    %v152 = vpop.permute.xlu0 %151
    %v155 = vlaneseq
    %v156 = vshrl.u32 %v155, 7
    %v157 = vsub.s32 0, %v156
    %v158 = vrot.slane %v148, %v157
    %v160 = vadd.f32 %v152, %v158
    %v161 = vmul.f32 %v142, 2.0
    %v162 = vsub.f32 %v160, %v161
    %v163 = vld [vmem:[%s4] sm:$0x1]
    %v164 = vunpack.c.0.s8 %v163
    %v165 = vcvt.s32.f32 %v164
    %v166 = vmul.f32 %v162, %v165
    %v167 = vmax.f32 %v166, 1e-12
    %v168 = vmin.f32 %v167, 1e+12
    %vm169 = vcmask 1043456
    %v170 = vsel %vm169, %v168, 0.0
    %v171 = vrot.slane %v170, 4
    %v172 = vadd.f32 %v170, %v171
    %v173 = vrot.slane %v172, 2
    %v174 = vadd.f32 %v172, %v173
    %v175 = vrot.slane %v174, 1
    %v176 = vadd.f32 %v174, %v175
    %177 = vst [vmem:[#allocation2] sm:$0xff] %v176
    // Predicated region
    $region22: #{tpu_custom_call.1} parent=1 // pred_check
      _
    $region23: #{tpu_custom_call.1} parent=1 // pred_check_branch
      %179 = sbr.rel (0) target = $region25
    $region24: #{tpu_custom_call.1} parent=1 // pred_region
      %s181 = ssub.s32 128, 128
      %182 = vsyncadd [#allocation3], %s181
      %s184 = sshll.u32 [#allocation2], 4
      %s185 = int_to_ptr.vmem [resolvable:$true] %s184
      %187 = dma.vmem_to_hbm [thread:$0]  %s185, 128, %s5, [#allocation3]
    $region25: #{tpu_custom_call.1} parent=1 // pred_fallthru
      _
    // Predicated region
    $region26: #{tpu_custom_call.1} parent=1 // pred_check
      _
    $region27: #{tpu_custom_call.1} parent=1 // pred_check_branch
      %189 = sbr.rel (0) target = $region29
    $region28: #{tpu_custom_call.1} parent=1 // pred_region
      %190 = dma.done [#allocation3], 128
    $region29: #{tpu_custom_call.1} parent=1 // pred_fallthru
      _
    %191 = vsyncpa [#allocation3], 1

</llo_original>
